<compile_context>
chip_gen: v6e
topology: v6e:2x2x1
jax: 0.10.0
libtpu: 0.0.40
codegen_flags: <defaults>
</compile_context>

<pallas_src>
import jax
import jax.numpy as jnp
from jax.experimental import pallas as pl
from jax.experimental.pallas import tpu as pltpu

_LANES = 128
_SUBLANES = 8
_MIN_TILE = _LANES * _SUBLANES        # 1024 elements = one (8,128) f32 vreg
_MAX_TILE = 1 << 20                   # up to 1M batch elements per grid step
_VMEM_LIMIT = 48 * 1024 * 1024        # raise scoped VMEM (v5e default is 16 MiB)


def _round_up(n, m):
    return ((n + m - 1) // m) * m


def _cdiv(a, b):
    return (a + b - 1) // b


def mlp_kernel(params_ref, x0_ref, x1_ref, o_ref):
    # params_ref: SMEM f32[17] = [w1(4x2) row-major | b1(4) | w2(4) | b2(1)]
    # x0_ref, x1_ref, o_ref: VMEM (tb_rows, 128) dense batch tiles.
    x0 = x0_ref[...]
    x1 = x1_ref[...]

    # Hidden unit 0 initializes the accumulator, fused with the b2 add
    # (saves a zeros-init and a trailing broadcast add per vreg).
    h0 = jnp.maximum(x0 * params_ref[0] + x1 * params_ref[1] + params_ref[8], 0.0)
    acc = h0 * params_ref[12] + params_ref[16]

    # Hidden units 1..3: fully unrolled VPU broadcast ops, no MXU.
    for j in range(1, 4):
        w1j0 = params_ref[2 * j + 0]   # w1[j, 0]
        w1j1 = params_ref[2 * j + 1]   # w1[j, 1]
        b1j = params_ref[8 + j]        # b1[j]
        w2j = params_ref[12 + j]       # w2[0, j]
        h = jnp.maximum(x0 * w1j0 + x1 * w1j1 + b1j, 0.0)
        acc = acc + h * w2j

    o_ref[...] = acc.astype(o_ref.dtype)


def simple_nn_forward(x, w1, b1, w2, b2):
    """x: (B, 2); w1: (4, 2) PyTorch layout; b1: (4,); w2: (1, 4); b2: (1,)."""
    B = x.shape[0]

    # Pad batch only to (8,128)-vreg alignment; the grid handles the rest via
    # cdiv + a partial final block (no full-tile rounding of B).
    b_pad = _round_up(max(B, 1), _MIN_TILE)
    rows = b_pad // _LANES

    # Batch tile: big enough to amortize the ~0.35 us per-step overhead, small
    # enough that the double-buffered footprint (~24 B/elem) stays well under
    # every generation's VMEM budget; aim for >= 2 grid steps so the parallel
    # axis can use both TensorCores on v7x.
    target = _round_up(_cdiv(B, 2), _MIN_TILE)
    tb = max(_MIN_TILE, min(_MAX_TILE, target))
    tb_rows = tb // _LANES
    grid = _cdiv(rows, tb_rows)

    # Batch-on-lanes layout: two dense (rows, 128) f32 slabs.
    xp = x if b_pad == B else jnp.pad(x, ((0, b_pad - B), (0, 0)))
    xf = xp.astype(jnp.float32)
    x0 = xf[:, 0].reshape(rows, _LANES)
    x1 = xf[:, 1].reshape(rows, _LANES)

    # All parameters as 17 SMEM scalars.
    params = jnp.concatenate(
        [w1.reshape(-1), b1.reshape(-1), w2.reshape(-1), b2.reshape(-1)]
    ).astype(jnp.float32)

    out2d = pl.pallas_call(
        mlp_kernel,
        out_shape=jax.ShapeDtypeStruct((rows, _LANES), jnp.float32),
        grid_spec=pl.GridSpec(
            grid=(grid,),
            in_specs=[
                pl.BlockSpec(memory_space=pltpu.MemorySpace.SMEM),
                pl.BlockSpec((tb_rows, _LANES), lambda i: (i, 0)),
                pl.BlockSpec((tb_rows, _LANES), lambda i: (i, 0)),
            ],
            out_specs=pl.BlockSpec((tb_rows, _LANES), lambda i: (i, 0)),
        ),
        compiler_params=pltpu.CompilerParams(
            dimension_semantics=("parallel",),
            vmem_limit_bytes=_VMEM_LIMIT,
        ),
        cost_estimate=pl.CostEstimate(
            flops=29 * b_pad,            # ~29 VPU flops per batch element
            transcendentals=0,
            bytes_accessed=12 * b_pad,   # read 2xf32, write 1xf32 per element
        ),
    )(params, x0, x1)

    # Padded lanes hold relu(b1)@w2 + b2 (nonzero) — the [:B] slice below is
    # what makes them harmless; do not drop it.
    return out2d.reshape(b_pad)[:B].reshape(B, 1).astype(x.dtype)


def reference_forward(x, w1, b1, w2, b2):
    h = jnp.maximum(x @ w1.T + b1, 0.0)
    return h @ w2.T + b2


if __name__ == "__main__":
    key = jax.random.PRNGKey(0)
    kx, k1, k2, k3, k4 = jax.random.split(key, 5)

    B = 8  # small batch
    x = jax.random.normal(kx, (B, 2), dtype=jnp.float32)

    # PyTorch nn.Linear shapes: weight (out, in), bias (out,)
    w1 = jax.random.normal(k1, (4, 2), dtype=jnp.float32) * 0.5
    b1 = jax.random.normal(k2, (4,), dtype=jnp.float32) * 0.1
    w2 = jax.random.normal(k3, (1, 4), dtype=jnp.float32) * 0.5
    b2 = jax.random.normal(k4, (1,), dtype=jnp.float32) * 0.1

    out = simple_nn_forward(x, w1, b1, w2, b2)
    jax.block_until_ready(out)

    ref = reference_forward(x, w1, b1, w2, b2)
    assert out.shape == (B, 1)
    assert jnp.allclose(out, ref, atol=1e-5, rtol=1e-5)

    print("KERNEL_OK")
</pallas_src>

<mosaic_0001>
module attributes {stable_mosaic.version = 11 : i64} {
  func.func @mlp_kernel(%arg0: i32, %arg1: memref<17xf32, #tpu.memory_space<smem>>, %arg2: memref<8x128xf32, #tpu.memory_space<vmem>>, %arg3: memref<8x128xf32, #tpu.memory_space<vmem>>, %arg4: memref<8x128xf32, #tpu.memory_space<vmem>>) attributes {dimension_semantics = [#tpu.dimension_semantics<parallel>], iteration_bounds = array<i64: 1>, scalar_prefetch = 0 : i64, scratch_operands = 0 : i64, tpu.core_type = #tpu.core_type<tc>, window_params = [{transform_indices = @transform_0, window_bounds = array<i64: 17>}, {transform_indices = @transform_1, window_bounds = array<i64: 8, 128>}, {transform_indices = @transform_2, window_bounds = array<i64: 8, 128>}, {transform_indices = @transform_3, window_bounds = array<i64: 8, 128>}]} {
    %c0 = arith.constant 0 : index
    %c0_0 = arith.constant 0 : index
    %0 = vector.load %arg2[%c0, %c0_0] : memref<8x128xf32, #tpu.memory_space<vmem>>, vector<8x128xf32>
    %c0_1 = arith.constant 0 : index
    %c0_2 = arith.constant 0 : index
    %1 = vector.load %arg3[%c0_1, %c0_2] : memref<8x128xf32, #tpu.memory_space<vmem>>, vector<8x128xf32>
    %c0_3 = arith.constant 0 : index
    %2 = memref.load %arg1[%c0_3] : memref<17xf32, #tpu.memory_space<smem>>
    %3 = vector.broadcast %2 : f32 to vector<8x128xf32>
    %4 = arith.mulf %0, %3 : vector<8x128xf32>
    %c1 = arith.constant 1 : index
    %5 = memref.load %arg1[%c1] : memref<17xf32, #tpu.memory_space<smem>>
    %6 = vector.broadcast %5 : f32 to vector<8x128xf32>
    %7 = arith.mulf %1, %6 : vector<8x128xf32>
    %8 = arith.addf %4, %7 : vector<8x128xf32>
    %c8 = arith.constant 8 : index
    %9 = memref.load %arg1[%c8] : memref<17xf32, #tpu.memory_space<smem>>
    %10 = vector.broadcast %9 : f32 to vector<8x128xf32>
    %11 = arith.addf %8, %10 : vector<8x128xf32>
    %cst = arith.constant 0.000000e+00 : f32
    %12 = vector.broadcast %cst : f32 to vector<8x128xf32>
    %13 = arith.maximumf %11, %12 : vector<8x128xf32>
    %c12 = arith.constant 12 : index
    %14 = memref.load %arg1[%c12] : memref<17xf32, #tpu.memory_space<smem>>
    %15 = vector.broadcast %14 : f32 to vector<8x128xf32>
    %16 = arith.mulf %13, %15 : vector<8x128xf32>
    %c16 = arith.constant 16 : index
    %17 = memref.load %arg1[%c16] : memref<17xf32, #tpu.memory_space<smem>>
    %18 = vector.broadcast %17 : f32 to vector<8x128xf32>
    %19 = arith.addf %16, %18 : vector<8x128xf32>
    %c2 = arith.constant 2 : index
    %20 = memref.load %arg1[%c2] : memref<17xf32, #tpu.memory_space<smem>>
    %c3 = arith.constant 3 : index
    %21 = memref.load %arg1[%c3] : memref<17xf32, #tpu.memory_space<smem>>
    %c9 = arith.constant 9 : index
    %22 = memref.load %arg1[%c9] : memref<17xf32, #tpu.memory_space<smem>>
    %c13 = arith.constant 13 : index
    %23 = memref.load %arg1[%c13] : memref<17xf32, #tpu.memory_space<smem>>
    %24 = vector.broadcast %20 : f32 to vector<8x128xf32>
    %25 = arith.mulf %0, %24 : vector<8x128xf32>
    %26 = vector.broadcast %21 : f32 to vector<8x128xf32>
    %27 = arith.mulf %1, %26 : vector<8x128xf32>
    %28 = arith.addf %25, %27 : vector<8x128xf32>
    %29 = vector.broadcast %22 : f32 to vector<8x128xf32>
    %30 = arith.addf %28, %29 : vector<8x128xf32>
    %cst_4 = arith.constant 0.000000e+00 : f32
    %31 = vector.broadcast %cst_4 : f32 to vector<8x128xf32>
    %32 = arith.maximumf %30, %31 : vector<8x128xf32>
    %33 = vector.broadcast %23 : f32 to vector<8x128xf32>
    %34 = arith.mulf %32, %33 : vector<8x128xf32>
    %35 = arith.addf %19, %34 : vector<8x128xf32>
    %c4 = arith.constant 4 : index
    %36 = memref.load %arg1[%c4] : memref<17xf32, #tpu.memory_space<smem>>
    %c5 = arith.constant 5 : index
    %37 = memref.load %arg1[%c5] : memref<17xf32, #tpu.memory_space<smem>>
    %c10 = arith.constant 10 : index
    %38 = memref.load %arg1[%c10] : memref<17xf32, #tpu.memory_space<smem>>
    %c14 = arith.constant 14 : index
    %39 = memref.load %arg1[%c14] : memref<17xf32, #tpu.memory_space<smem>>
    %40 = vector.broadcast %36 : f32 to vector<8x128xf32>
    %41 = arith.mulf %0, %40 : vector<8x128xf32>
    %42 = vector.broadcast %37 : f32 to vector<8x128xf32>
    %43 = arith.mulf %1, %42 : vector<8x128xf32>
    %44 = arith.addf %41, %43 : vector<8x128xf32>
    %45 = vector.broadcast %38 : f32 to vector<8x128xf32>
    %46 = arith.addf %44, %45 : vector<8x128xf32>
    %cst_5 = arith.constant 0.000000e+00 : f32
    %47 = vector.broadcast %cst_5 : f32 to vector<8x128xf32>
    %48 = arith.maximumf %46, %47 : vector<8x128xf32>
    %49 = vector.broadcast %39 : f32 to vector<8x128xf32>
    %50 = arith.mulf %48, %49 : vector<8x128xf32>
    %51 = arith.addf %35, %50 : vector<8x128xf32>
    %c6 = arith.constant 6 : index
    %52 = memref.load %arg1[%c6] : memref<17xf32, #tpu.memory_space<smem>>
    %c7 = arith.constant 7 : index
    %53 = memref.load %arg1[%c7] : memref<17xf32, #tpu.memory_space<smem>>
    %c11 = arith.constant 11 : index
    %54 = memref.load %arg1[%c11] : memref<17xf32, #tpu.memory_space<smem>>
    %c15 = arith.constant 15 : index
    %55 = memref.load %arg1[%c15] : memref<17xf32, #tpu.memory_space<smem>>
    %56 = vector.broadcast %52 : f32 to vector<8x128xf32>
    %57 = arith.mulf %0, %56 : vector<8x128xf32>
    %58 = vector.broadcast %53 : f32 to vector<8x128xf32>
    %59 = arith.mulf %1, %58 : vector<8x128xf32>
    %60 = arith.addf %57, %59 : vector<8x128xf32>
    %61 = vector.broadcast %54 : f32 to vector<8x128xf32>
    %62 = arith.addf %60, %61 : vector<8x128xf32>
    %cst_6 = arith.constant 0.000000e+00 : f32
    %63 = vector.broadcast %cst_6 : f32 to vector<8x128xf32>
    %64 = arith.maximumf %62, %63 : vector<8x128xf32>
    %65 = vector.broadcast %55 : f32 to vector<8x128xf32>
    %66 = arith.mulf %64, %65 : vector<8x128xf32>
    %67 = arith.addf %51, %66 : vector<8x128xf32>
    %c0_7 = arith.constant 0 : index
    %c0_8 = arith.constant 0 : index
    %68 = vector.load %arg4[%c0_7, %c0_8] : memref<8x128xf32, #tpu.memory_space<vmem>>, vector<8x128xf32>
    tpu.vector_store %arg4[%c0_7, %c0_8], %67 {strides = array<i32>} : memref<8x128xf32, #tpu.memory_space<vmem>>, vector<8x128xf32>,
    return
  }
  func.func @transform_0(%arg0: i32) -> i32 {
    %c0_i32 = arith.constant 0 : i32
    %c0_i32_0 = arith.constant 0 : i32
    return %c0_i32 : i32
  }
  func.func @transform_1(%arg0: i32) -> (i32, i32) {
    %c0_i32 = arith.constant 0 : i32
    %c0_i32_0 = arith.constant 0 : i32
    return %arg0, %c0_i32 : i32, i32
  }
  func.func @transform_2(%arg0: i32) -> (i32, i32) {
    %c0_i32 = arith.constant 0 : i32
    %c0_i32_0 = arith.constant 0 : i32
    return %arg0, %c0_i32 : i32, i32
  }
  func.func @transform_3(%arg0: i32) -> (i32, i32) {
    %c0_i32 = arith.constant 0 : i32
    %c0_i32_0 = arith.constant 0 : i32
    return %arg0, %c0_i32 : i32, i32
  }
}

</mosaic_0001>

<llo_original>
// kernel: tpu_custom_call.1
$region0: #{tpu_custom_call.1}
  #allocation0 [shape = 'u32[]', space=smem, size = 0x4, offset = 0x4, fixed_abs, tag = 'smem constant byte address 0x4 - core index']
  #allocation1 [shape = 'u32[144,128]{1,0:T(1,128)}', space=vmem, size = 0x12000, scoped, tag = 'internal scratch']
  %s0 = inlined_call_operand.hbm [shape: f32[17], index: 0, kind: input, shape index: {}]
  %s1 = inlined_call_operand.hbm [shape: f32[8,128], index: 1, kind: input, shape index: {}]
  %s2 = inlined_call_operand.hbm [shape: f32[8,128], index: 2, kind: input, shape index: {}]
  %s3 = inlined_call_operand.hbm [shape: f32[8,128], index: 3, kind: output, shape index: {}]
  %s4 = sld [smem:[#allocation0]]
  $region34: #{tpu_custom_call.1} parent=0
    _
  %s6 = ssub.s32 1, %s4
  %s7 = scalar_select 0, %s6, %s4
  $region1: #{tpu_custom_call.1} parent=0
    #allocation2 [shape = 'u8[512]{0}', space=smem, size = 0x200, scoped, tag = 'input window, operand 0, single buffered']
    #allocation3 [shape = 's32[1]{0}', space=sflag, size = 0x4, scoped, tag = 'scoped memory for tpu_custom_call.1']
    #allocation4 [shape = 's32[1]{0}', space=sflag, size = 0x4, scoped, tag = 'scoped memory for tpu_custom_call.1']
    #allocation5 [shape = 's32[1]{0}', space=sflag, size = 0x4, scoped, tag = 'scoped memory for tpu_custom_call.1']
    #allocation6 [shape = 'u8[4096]{0}', space=vmem, size = 0x1000, scoped, tag = 'input window, operand 1, single buffered']
    #allocation7 [shape = 'u8[4096]{0}', space=vmem, size = 0x1000, scoped, tag = 'input window, operand 2, single buffered']
    #allocation8 [shape = 's32[1]{0}', space=sflag, size = 0x4, scoped, tag = 'scoped memory for tpu_custom_call.1']
    #allocation9 [shape = 'u8[4096]{0}', space=vmem, size = 0x1000, scoped, tag = 'output window, operand 0, single buffered']
    %8 = vsyncpa [#allocation5], 0
    %9 = vsyncpa [#allocation3], 0
    %10 = vsyncpa [#allocation8], 0
    %11 = vsyncpa [#allocation4], 0
    // Predicated region
    $region2: #{tpu_custom_call.1} parent=1 // pred_check
      _
    $region3: #{tpu_custom_call.1} parent=1 // pred_check_branch
      %13 = sbr.rel (0) target = $region5
    $region4: #{tpu_custom_call.1} parent=1 // pred_region
      %s15 = ssub.s32 16, 16
      %16 = vsyncadd [#allocation5], %s15
      %19 = dma.hbm_to_smem %s0, 16, [#allocation2], [#allocation5]
    $region5: #{tpu_custom_call.1} parent=1 // pred_fallthru
      _
    // Predicated region
    $region6: #{tpu_custom_call.1} parent=1 // pred_check
      _
    $region7: #{tpu_custom_call.1} parent=1 // pred_check_branch
      %21 = sbr.rel (0) target = $region9
    $region8: #{tpu_custom_call.1} parent=1 // pred_region
      %s23 = ssub.s32 128, 128
      %24 = vsyncadd [#allocation3], %s23
      %s26 = sshll.u32 [#allocation6], 4
      %s27 = int_to_ptr.vmem [resolvable:$true] %s26
      %29 = dma.hbm_to_vmem [thread:$0]  %s1, 128, %s27, [#allocation3]
    $region9: #{tpu_custom_call.1} parent=1 // pred_fallthru
      _
    // Predicated region
    $region10: #{tpu_custom_call.1} parent=1 // pred_check
      _
    $region11: #{tpu_custom_call.1} parent=1 // pred_check_branch
      %31 = sbr.rel (0) target = $region13
    $region12: #{tpu_custom_call.1} parent=1 // pred_region
      %s33 = ssub.s32 128, 128
      %34 = vsyncadd [#allocation8], %s33
      %s36 = sshll.u32 [#allocation7], 4
      %s37 = int_to_ptr.vmem [resolvable:$true] %s36
      %39 = dma.hbm_to_vmem [thread:$0]  %s2, 128, %s37, [#allocation8]
    $region13: #{tpu_custom_call.1} parent=1 // pred_fallthru
      _
    // Predicated region
    $region14: #{tpu_custom_call.1} parent=1 // pred_check
      _
    $region15: #{tpu_custom_call.1} parent=1 // pred_check_branch
      %41 = sbr.rel (0) target = $region17
    $region16: #{tpu_custom_call.1} parent=1 // pred_region
      %42 = dma.done [#allocation5], 16
    $region17: #{tpu_custom_call.1} parent=1 // pred_fallthru
      _
    // Predicated region
    $region18: #{tpu_custom_call.1} parent=1 // pred_check
      _
    $region19: #{tpu_custom_call.1} parent=1 // pred_check_branch
      %44 = sbr.rel (0) target = $region21
    $region20: #{tpu_custom_call.1} parent=1 // pred_region
      %45 = dma.done [#allocation3], 128
    $region21: #{tpu_custom_call.1} parent=1 // pred_fallthru
      _
    // Predicated region
    $region22: #{tpu_custom_call.1} parent=1 // pred_check
      _
    $region23: #{tpu_custom_call.1} parent=1 // pred_check_branch
      %47 = sbr.rel (0) target = $region25
    $region24: #{tpu_custom_call.1} parent=1 // pred_region
      %48 = dma.done [#allocation8], 128
    $region25: #{tpu_custom_call.1} parent=1 // pred_fallthru
      _
    %49 = sfence
    %v50 = vld [vmem:[#allocation6] sm:$0xff]
    %v51 = vld [vmem:[#allocation7] sm:$0xff]
    %s52 = sld [smem:[#allocation2]]
    %v53 = vstv %s52
    %v54 = vmul.f32 %v50, %v53
    %s55 = sld [smem:[#allocation2 + $0x1]]
    %v56 = vstv %s55
    %v57 = vmul.f32 %v51, %v56
    %v58 = vadd.f32 %v54, %v57
    %s59 = sld [smem:[#allocation2 + $0x8]]
    %v60 = vstv %s59
    %v61 = vadd.f32 %v58, %v60
    %v62 = vmax.f32 %v61, 0.0
    %s63 = sld [smem:[#allocation2 + $0xc]]
    %v64 = vstv %s63
    %v65 = vmul.f32 %v62, %v64
    %s66 = sld [smem:[#allocation2 + $0x10]]
    %v67 = vstv %s66
    %v68 = vadd.f32 %v65, %v67
    %s69 = sld [smem:[#allocation2 + $0x2]]
    %s70 = sld [smem:[#allocation2 + $0x3]]
    %s71 = sld [smem:[#allocation2 + $0x9]]
    %s72 = sld [smem:[#allocation2 + $0xd]]
    %v73 = vstv %s69
    %v74 = vmul.f32 %v50, %v73
    %v75 = vstv %s70
    %v76 = vmul.f32 %v51, %v75
    %v77 = vadd.f32 %v74, %v76
    %v78 = vstv %s71
    %v79 = vadd.f32 %v77, %v78
    %v80 = vmax.f32 %v79, 0.0
    %v81 = vstv %s72
    %v82 = vmul.f32 %v80, %v81
    %v83 = vadd.f32 %v68, %v82
    %s84 = sld [smem:[#allocation2 + $0x4]]
    %s85 = sld [smem:[#allocation2 + $0x5]]
    %s86 = sld [smem:[#allocation2 + $0xa]]
    %s87 = sld [smem:[#allocation2 + $0xe]]
    %v88 = vstv %s84
    %v89 = vmul.f32 %v50, %v88
    %v90 = vstv %s85
    %v91 = vmul.f32 %v51, %v90
    %v92 = vadd.f32 %v89, %v91
    %v93 = vstv %s86
    %v94 = vadd.f32 %v92, %v93
    %v95 = vmax.f32 %v94, 0.0
    %v96 = vstv %s87
    %v97 = vmul.f32 %v95, %v96
    %v98 = vadd.f32 %v83, %v97
    %s99 = sld [smem:[#allocation2 + $0x6]]
    %s100 = sld [smem:[#allocation2 + $0x7]]
    %s101 = sld [smem:[#allocation2 + $0xb]]
    %s102 = sld [smem:[#allocation2 + $0xf]]
    %v103 = vstv %s99
    %v104 = vmul.f32 %v50, %v103
    %v105 = vstv %s100
    %v106 = vmul.f32 %v51, %v105
    %v107 = vadd.f32 %v104, %v106
    %v108 = vstv %s101
    %v109 = vadd.f32 %v107, %v108
    %v110 = vmax.f32 %v109, 0.0
    %v111 = vstv %s102
    %v112 = vmul.f32 %v110, %v111
    %v113 = vadd.f32 %v98, %v112
    %114 = vst [vmem:[#allocation9] sm:$0xff] %v113
    // Predicated region
    $region26: #{tpu_custom_call.1} parent=1 // pred_check
      _
    $region27: #{tpu_custom_call.1} parent=1 // pred_check_branch
      %116 = sbr.rel (0) target = $region29
    $region28: #{tpu_custom_call.1} parent=1 // pred_region
      %s118 = ssub.s32 128, 128
      %119 = vsyncadd [#allocation4], %s118
      %s121 = sshll.u32 [#allocation9], 4
      %s122 = int_to_ptr.vmem [resolvable:$true] %s121
      %124 = dma.vmem_to_hbm [thread:$0]  %s122, 128, %s3, [#allocation4]
    $region29: #{tpu_custom_call.1} parent=1 // pred_fallthru
      _
    // Predicated region
    $region30: #{tpu_custom_call.1} parent=1 // pred_check
      _
    $region31: #{tpu_custom_call.1} parent=1 // pred_check_branch
      %126 = sbr.rel (0) target = $region33
    $region32: #{tpu_custom_call.1} parent=1 // pred_region
      %127 = dma.done [#allocation4], 128
    $region33: #{tpu_custom_call.1} parent=1 // pred_fallthru
      _
    %128 = vsyncpa [#allocation3], 1
    %129 = vsyncpa [#allocation8], 1
    %130 = vsyncpa [#allocation4], 1
    %131 = vsyncpa [#allocation5], 1

</llo_original>
